<compile_context>
chip_gen: v7x
topology: tpu7x:2x2x1
jax: 0.10.0
libtpu: 0.0.40
codegen_flags: <defaults>
</compile_context>

<pallas_src>
import functools

import numpy as np
import jax
import jax.numpy as jnp
from jax.experimental import pallas as pl
from jax.experimental.pallas import tpu as pltpu

SQRT_2PI = float(np.sqrt(2.0 * np.pi))


def _lowrank_kernel(x_ref, wbig_ref, wtb_ref, out_ref, *, Bblk, C, T, NT, Tout):
    """One grid step = Bblk batch elements.

    x_ref:    (Bblk, C, T, P)     f32   activations in the ORIGINAL x layout
    wbig_ref: (C, P, J_pad)       bf16  fused wc * gaussian read-out weights (resident)
    wtb_ref:  (NT + 1, J_pad)     f32   rows 0..NT-1 = wt, row NT = wb (resident)
    out_ref:  (Bblk, Tout, J_pad) f32
    """
    P = x_ref.shape[-1]
    jp = wbig_ref.shape[-1]

    # Low-rank channel/spatial read-out: per-channel K=P MXU matmuls with f32
    # accumulation.  Looping over C keeps x in its original layout (no transpose
    # anywhere); the bf16 cast runs on the VPU here, hidden under the input DMA.
    acc = None
    for c in range(C):                                   # C static & small -> unrolled
        # (Bblk, T, P) -> (Bblk*T, P): pure relabel when T % 8 == 0 (demo: T = 8).
        xc = x_ref[:, c, :, :].reshape(Bblk * T, P).astype(jnp.bfloat16)
        contrib = jnp.dot(xc, wbig_ref[c], preferred_element_type=jnp.float32)
        acc = contrib if acc is None else acc + contrib
    r = acc.reshape(Bblk, T, jp)                         # (Bblk, T, J_pad) f32

    # Grouped temporal conv (valid, kernel NT) + bias + leaky-relu(0.1), vectorized
    # over the whole batch block -> NT slices, one full-block store.
    wtb = wtb_ref[...]                                   # (NT+1, J_pad)
    out = jnp.broadcast_to(wtb[NT:NT + 1, :][None], (Bblk, Tout, jp))  # bias, hoisted
    # TODO(synk): for large NT/Tout replace the unaligned sublane slices below with
    #             pltpu.roll along the sublane axis (XLU slot) or pad Tout to 8.
    for k in range(NT):
        out = out + r[:, k:k + Tout, :] * wtb[k:k + 1, :][None]
    out_ref[...] = jnp.where(out > 0.0, out, 0.1 * out)


def _round_up(x, m):
    return ((x + m - 1) // m) * m


def _pick_batch_block(B, T, C, P, J_pad, Tout, nt, *,
                      target_rows=256, vmem_budget=40 << 20):
    """Pick Bblk (a divisor of B) and return (Bblk, estimated VMEM footprint bytes).

    Rules (perf review):
      * keep grid length B//Bblk >= 2 when B >= 2, so v7x's 2 TensorCores both work,
      * stop growing once Bblk*T >= target_rows (MXU-friendly M on v6e/v7x),
      * never exceed a VMEM byte budget (double-buffered x/out + resident weights),
        which also keeps the pipeline at depth 2 on v7x's 64 MiB VMEM.
    """
    def footprint(d):
        return (2 * d * C * T * P * 4            # x block, f32, double-buffered
                + 2 * d * Tout * J_pad * 4       # out block, f32, double-buffered
                + d * T * J_pad * 4              # f32 matmul accumulator temporaries
                + C * P * J_pad * 2              # resident fused weights (bf16, 1 buffer)
                + (nt + 1) * J_pad * 4)          # resident wt+wb (f32, 1 buffer)

    divisors = [d for d in range(1, B + 1) if B % d == 0]
    if B >= 2:
        divisors = [d for d in divisors if B // d >= 2]
    fitting = [d for d in divisors if footprint(d) <= vmem_budget]
    if not fitting:
        fitting = [divisors[0]]
    for d in fitting:                                    # increasing order
        if d * T >= target_rows:
            return d, footprint(d)
    best = fitting[-1]
    return best, footprint(best)


def lowrank_net_forward(x, targets, params, nt):
    """x: (B, C, T, H, W) float32; targets: (n, ntargets) bool-ish (concrete)."""
    B, C, T, H, W = x.shape
    P = H * W
    Tout = T - nt + 1

    mask = np.any(np.asarray(targets), axis=0)
    idx = np.asarray(np.nonzero(mask)[0])
    J = int(idx.size)
    J_pad = _round_up(max(J, 1), 128)

    def masked_padded(a, pad_value=0.0):
        a = jnp.asarray(a, jnp.float32)
        a = a[..., idx] if a.ndim > 1 else a[idx][None, :]
        return jnp.pad(a, [(0, 0)] * (a.ndim - 1) + [(0, J_pad - J)],
                       constant_values=pad_value)

    wc = masked_padded(params["wc"])                    # (C, J_pad)   pad 0 -> dead cols
    wt = masked_padded(params["wt"])                    # (nt, J_pad)
    wb = masked_padded(params["wb"])                    # (1, J_pad)
    wx = masked_padded(params["wx"])                    # (1, J_pad)
    wy = masked_padded(params["wy"])                    # (1, J_pad)
    sx = masked_padded(params["wsigmax"], 1.0)          # pad 1.0 -> no div-by-zero
    sy = masked_padded(params["wsigmay"], 1.0)

    # --- Gaussian read-out weights, precomputed ONCE in the wrapper (batch independent) ---
    offy = (H - 1) / H
    offx = (W - 1) / W
    yv = jnp.linspace(-offy, offy, H, dtype=jnp.float32)
    xv = jnp.linspace(-offx, offx, W, dtype=jnp.float32)
    yg2, xg2 = jnp.meshgrid(yv, xv, indexing="ij")      # (H, W) each
    xg = xg2.reshape(P, 1)
    yg = yg2.reshape(P, 1)
    dx = (xg - wx) ** 2 / (2.0 * sx * sx)               # (P, J_pad)
    dy = (yg - wy) ** 2 / (2.0 * sy * sy)               # (P, J_pad)
    ws_t = jnp.exp(-dx - dy) / (SQRT_2PI * sx * sy * (W * H / 4.0))   # (P, J_pad)

    # Fuse channel weights into a per-channel read-out matrix:
    #   W_big[c, p, j] = wc[c, j] * ws[j, p]   (bf16 MXU operand)
    w_big = (wc[:, None, :] * ws_t[None, :, :]).astype(jnp.bfloat16)  # (C, P, J_pad)

    # Pack temporal-conv weights + bias into one small resident array.
    wtb = jnp.concatenate([wt, wb], axis=0)             # (nt+1, J_pad) f32

    # Identity subnet; keep the ORIGINAL layout and dtype: only merge H,W (free).
    xk = jnp.asarray(x, jnp.float32).reshape(B, C, T, P)

    Bblk, fp_bytes = _pick_batch_block(B, T, C, P, J_pad, Tout, nt)
    grid = (B // Bblk,)
    # >= 32 MiB (raises v5e's 16 MiB default), <= 64 MiB (v7x physical VMEM).
    vmem_limit = int(min(64 << 20, max(32 << 20, (fp_bytes * 3) // 2)))

    kernel = functools.partial(_lowrank_kernel, Bblk=Bblk, C=C, T=T, NT=nt, Tout=Tout)

    out_padded = pl.pallas_call(
        kernel,
        out_shape=jax.ShapeDtypeStruct((B, Tout, J_pad), jnp.float32),
        grid=grid,
        in_specs=[
            # x block in original layout, f32 (cast to bf16 inside the kernel).
            pl.BlockSpec((Bblk, C, T, P), lambda i: (i, 0, 0, 0)),
            # Resident weights: constant index_map -> single pipeline buffer.
            pl.BlockSpec((C, P, J_pad), lambda i: (0, 0, 0),
                         pipeline_mode=pl.Buffered(1)),
            pl.BlockSpec((nt + 1, J_pad), lambda i: (0, 0),
                         pipeline_mode=pl.Buffered(1)),
        ],
        out_specs=pl.BlockSpec((Bblk, Tout, J_pad), lambda i: (i, 0, 0)),
        compiler_params=pltpu.CompilerParams(
            dimension_semantics=("parallel",),
            vmem_limit_bytes=vmem_limit),
    )(xk, w_big, wtb)

    # Lane-padded output; downstream could consume the padded layout directly, but we
    # slice to match the PyTorch reference exactly.
    return out_padded[:, :, :J]


def reference_forward(x, targets, params, nt):
    """Pure-JAX replica of LowRankNet.forward (threed=False, sample=False, relu)."""
    B, C, T, H, W = x.shape
    mask = np.any(np.asarray(targets), axis=0)
    idx = np.asarray(np.nonzero(mask)[0])
    wc = jnp.asarray(params["wc"], jnp.float32)[:, idx]
    wt = jnp.asarray(params["wt"], jnp.float32)[:, idx]
    wb = jnp.asarray(params["wb"], jnp.float32)[idx]
    wx = jnp.asarray(params["wx"], jnp.float32)[idx]
    wy = jnp.asarray(params["wy"], jnp.float32)[idx]
    sx = jnp.asarray(params["wsigmax"], jnp.float32)[idx]
    sy = jnp.asarray(params["wsigmay"], jnp.float32)[idx]

    offy = (H - 1) / H
    offx = (W - 1) / W
    yv = jnp.linspace(-offy, offy, H, dtype=jnp.float32)
    xv = jnp.linspace(-offx, offx, W, dtype=jnp.float32)
    yg2, xg2 = jnp.meshgrid(yv, xv, indexing="ij")
    xgf = xg2.reshape(1, -1)
    ygf = yg2.reshape(1, -1)

    dx = (xgf - wx[:, None]) ** 2 / 2 / sx[:, None] ** 2
    dy = (ygf - wy[:, None]) ** 2 / 2 / sy[:, None] ** 2
    ws = jnp.exp(-dx - dy) / (SQRT_2PI * sx[:, None] * sy[:, None] * W * H / 4)

    xs = jnp.asarray(x, jnp.float32).transpose(0, 2, 1, 3, 4).reshape(B * T, C, H * W)
    Rr = jnp.einsum("ncp,cj->njp", xs, wc, precision=jax.lax.Precision.HIGHEST)
    Rr = jnp.einsum("njp,jp->nj", Rr, ws, precision=jax.lax.Precision.HIGHEST)
    Rr = Rr.reshape(B, T, -1).transpose(0, 2, 1)                 # (B, J, T)

    Tout = T - nt + 1
    cols = []
    for p in range(Tout):
        s = wb[None, :]
        for k in range(nt):
            s = s + Rr[:, :, p + k] * wt[k, :][None, :]
        cols.append(s)
    out = jnp.stack(cols, axis=-1)                               # (B, J, Tout)
    out = jnp.where(out > 0, out, 0.1 * out)
    return out.transpose(0, 2, 1)                                # (B, Tout, J)


if __name__ == "__main__":
    B, C_IN, T, H, W = 2, 4, 8, 16, 16
    NTARGETS, NT = 6, 3

    key = jax.random.PRNGKey(0)
    ks = jax.random.split(key, 8)
    x = jax.random.normal(ks[0], (B, C_IN, T, H, W), jnp.float32)

    # targets: mask = any over dim 0; last target column inactive -> masked out
    targets = np.zeros((3, NTARGETS), dtype=bool)
    targets[:, :5] = True

    # deterministic parameter init matching the PyTorch __init__ shapes/distributions
    params = dict(
        wc=(0.1 * jax.random.normal(ks[1], (C_IN, NTARGETS)) / 10 + 1) / C_IN,
        wt=(1 + 0.1 * jax.random.normal(ks[2], (NT, NTARGETS))) / NT,
        wb=jax.random.normal(ks[3], (NTARGETS,)) * 0.05 + 0.6,
        wx=-0.4 + 0.8 * jax.random.uniform(ks[4], (NTARGETS,)),
        wy=-0.4 + 0.8 * jax.random.uniform(ks[5], (NTARGETS,)),
        wsigmax=0.5 + 0.1 * jax.random.uniform(ks[6], (NTARGETS,)),
        wsigmay=0.5 + 0.1 * jax.random.uniform(ks[7], (NTARGETS,)),
    )

    out = lowrank_net_forward(x, targets, params, nt=NT)
    out = jax.block_until_ready(out)

    ref = reference_forward(x, targets, params, nt=NT)
    # bf16 MXU operands with f32 (per-channel) accumulation: slightly looser tolerance
    # than pure f32.  TODO(synk): re-verify tolerance for production-scale C*P.
    np.testing.assert_allclose(np.asarray(out), np.asarray(ref), rtol=2e-3, atol=2e-3)

    print("KERNEL_OK")
</pallas_src>

<mosaic_0001>
module attributes {stable_mosaic.version = 11 : i64} {
  func.func @_lowrank_kernel(%arg0: i32, %arg1: memref<1x4x8x256xf32, #tpu.memory_space<vmem>>, %arg2: memref<4x256x128xbf16, #tpu.memory_space<vmem>>, %arg3: memref<4x128xf32, #tpu.memory_space<vmem>>, %arg4: memref<1x6x128xf32, #tpu.memory_space<vmem>>) attributes {dimension_semantics = [#tpu.dimension_semantics<parallel>], iteration_bounds = array<i64: 2>, scalar_prefetch = 0 : i64, scratch_operands = 0 : i64, tpu.core_type = #tpu.core_type<tc>, window_params = [{transform_indices = @transform_0, window_bounds = array<i64: 1, 4, 8, 256>}, {pipeline_mode = #tpu.pipeline_mode<synchronous>, transform_indices = @transform_1, window_bounds = array<i64: 4, 256, 128>}, {pipeline_mode = #tpu.pipeline_mode<synchronous>, transform_indices = @transform_2, window_bounds = array<i64: 4, 128>}, {transform_indices = @transform_3, window_bounds = array<i64: 1, 6, 128>}]} {
    %c0 = arith.constant 0 : index
    %c0_0 = arith.constant 0 : index
    %c0_1 = arith.constant 0 : index
    %c0_2 = arith.constant 0 : index
    %0 = vector.load %arg1[%c0, %c0_0, %c0_1, %c0_2] : memref<1x4x8x256xf32, #tpu.memory_space<vmem>>, vector<1x1x8x256xf32>
    %1 = vector.shape_cast %0 : vector<1x1x8x256xf32> to vector<1x8x256xf32>
    %2 = vector.shape_cast %1 : vector<1x8x256xf32> to vector<8x256xf32>
    %3 = arith.truncf %2 : vector<8x256xf32> to vector<8x256xbf16>
    %c0_3 = arith.constant 0 : index
    %c0_4 = arith.constant 0 : index
    %c0_5 = arith.constant 0 : index
    %4 = vector.load %arg2[%c0_3, %c0_4, %c0_5] : memref<4x256x128xbf16, #tpu.memory_space<vmem>>, vector<1x256x128xbf16>
    %5 = vector.shape_cast %4 : vector<1x256x128xbf16> to vector<256x128xbf16>
    %cst = arith.constant dense<0.000000e+00> : vector<8x128xf32>
    %6 = tpu.matmul %3, %5, %cst {dimension_numbers = #tpu.dot_dimension_numbers<[1], [0], [0], [1], [0, 0, 1, 1], [], []>} : vector<8x256xbf16>, vector<256x128xbf16>, vector<8x128xf32> -> vector<8x128xf32>
    %c0_6 = arith.constant 0 : index
    %c1 = arith.constant 1 : index
    %c0_7 = arith.constant 0 : index
    %c0_8 = arith.constant 0 : index
    %7 = vector.load %arg1[%c0_6, %c1, %c0_7, %c0_8] : memref<1x4x8x256xf32, #tpu.memory_space<vmem>>, vector<1x1x8x256xf32>
    %8 = vector.shape_cast %7 : vector<1x1x8x256xf32> to vector<1x8x256xf32>
    %9 = vector.shape_cast %8 : vector<1x8x256xf32> to vector<8x256xf32>
    %10 = arith.truncf %9 : vector<8x256xf32> to vector<8x256xbf16>
    %c1_9 = arith.constant 1 : index
    %c0_10 = arith.constant 0 : index
    %c0_11 = arith.constant 0 : index
    %11 = vector.load %arg2[%c1_9, %c0_10, %c0_11] : memref<4x256x128xbf16, #tpu.memory_space<vmem>>, vector<1x256x128xbf16>
    %12 = vector.shape_cast %11 : vector<1x256x128xbf16> to vector<256x128xbf16>
    %cst_12 = arith.constant dense<0.000000e+00> : vector<8x128xf32>
    %13 = tpu.matmul %10, %12, %cst_12 {dimension_numbers = #tpu.dot_dimension_numbers<[1], [0], [0], [1], [0, 0, 1, 1], [], []>} : vector<8x256xbf16>, vector<256x128xbf16>, vector<8x128xf32> -> vector<8x128xf32>
    %14 = arith.addf %6, %13 : vector<8x128xf32>
    %c0_13 = arith.constant 0 : index
    %c2 = arith.constant 2 : index
    %c0_14 = arith.constant 0 : index
    %c0_15 = arith.constant 0 : index
    %15 = vector.load %arg1[%c0_13, %c2, %c0_14, %c0_15] : memref<1x4x8x256xf32, #tpu.memory_space<vmem>>, vector<1x1x8x256xf32>
    %16 = vector.shape_cast %15 : vector<1x1x8x256xf32> to vector<1x8x256xf32>
    %17 = vector.shape_cast %16 : vector<1x8x256xf32> to vector<8x256xf32>
    %18 = arith.truncf %17 : vector<8x256xf32> to vector<8x256xbf16>
    %c2_16 = arith.constant 2 : index
    %c0_17 = arith.constant 0 : index
    %c0_18 = arith.constant 0 : index
    %19 = vector.load %arg2[%c2_16, %c0_17, %c0_18] : memref<4x256x128xbf16, #tpu.memory_space<vmem>>, vector<1x256x128xbf16>
    %20 = vector.shape_cast %19 : vector<1x256x128xbf16> to vector<256x128xbf16>
    %cst_19 = arith.constant dense<0.000000e+00> : vector<8x128xf32>
    %21 = tpu.matmul %18, %20, %cst_19 {dimension_numbers = #tpu.dot_dimension_numbers<[1], [0], [0], [1], [0, 0, 1, 1], [], []>} : vector<8x256xbf16>, vector<256x128xbf16>, vector<8x128xf32> -> vector<8x128xf32>
    %22 = arith.addf %14, %21 : vector<8x128xf32>
    %c0_20 = arith.constant 0 : index
    %c3 = arith.constant 3 : index
    %c0_21 = arith.constant 0 : index
    %c0_22 = arith.constant 0 : index
    %23 = vector.load %arg1[%c0_20, %c3, %c0_21, %c0_22] : memref<1x4x8x256xf32, #tpu.memory_space<vmem>>, vector<1x1x8x256xf32>
    %24 = vector.shape_cast %23 : vector<1x1x8x256xf32> to vector<1x8x256xf32>
    %25 = vector.shape_cast %24 : vector<1x8x256xf32> to vector<8x256xf32>
    %26 = arith.truncf %25 : vector<8x256xf32> to vector<8x256xbf16>
    %c3_23 = arith.constant 3 : index
    %c0_24 = arith.constant 0 : index
    %c0_25 = arith.constant 0 : index
    %27 = vector.load %arg2[%c3_23, %c0_24, %c0_25] : memref<4x256x128xbf16, #tpu.memory_space<vmem>>, vector<1x256x128xbf16>
    %28 = vector.shape_cast %27 : vector<1x256x128xbf16> to vector<256x128xbf16>
    %cst_26 = arith.constant dense<0.000000e+00> : vector<8x128xf32>
    %29 = tpu.matmul %26, %28, %cst_26 {dimension_numbers = #tpu.dot_dimension_numbers<[1], [0], [0], [1], [0, 0, 1, 1], [], []>} : vector<8x256xbf16>, vector<256x128xbf16>, vector<8x128xf32> -> vector<8x128xf32>
    %30 = arith.addf %22, %29 : vector<8x128xf32>
    %31 = vector.shape_cast %30 : vector<8x128xf32> to vector<1x8x128xf32>
    %c0_27 = arith.constant 0 : index
    %c0_28 = arith.constant 0 : index
    %32 = vector.load %arg3[%c0_27, %c0_28] : memref<4x128xf32, #tpu.memory_space<vmem>>, vector<4x128xf32>
    %33 = vector.extract_strided_slice %32 {offsets = [3, 0], sizes = [1, 128], strides = [1, 1]} : vector<4x128xf32> to vector<1x128xf32>
    %34 = vector.shape_cast %33 : vector<1x128xf32> to vector<1x1x128xf32>
    %35 = vector.shape_cast %34 : vector<1x1x128xf32> to vector<1x1x128xf32>
    %36 = vector.broadcast %35 : vector<1x1x128xf32> to vector<1x6x128xf32>
    %37 = vector.extract_strided_slice %31 {offsets = [0, 0, 0], sizes = [1, 6, 128], strides = [1, 1, 1]} : vector<1x8x128xf32> to vector<1x6x128xf32>
    %38 = vector.extract_strided_slice %32 {offsets = [0, 0], sizes = [1, 128], strides = [1, 1]} : vector<4x128xf32> to vector<1x128xf32>
    %39 = vector.shape_cast %38 : vector<1x128xf32> to vector<1x1x128xf32>
    %40 = vector.broadcast %39 : vector<1x1x128xf32> to vector<1x6x128xf32>
    %41 = arith.mulf %37, %40 : vector<1x6x128xf32>
    %42 = arith.addf %36, %41 : vector<1x6x128xf32>
    %43 = vector.extract_strided_slice %31 {offsets = [0, 1, 0], sizes = [1, 6, 128], strides = [1, 1, 1]} : vector<1x8x128xf32> to vector<1x6x128xf32>
    %44 = vector.extract_strided_slice %32 {offsets = [1, 0], sizes = [1, 128], strides = [1, 1]} : vector<4x128xf32> to vector<1x128xf32>
    %45 = vector.shape_cast %44 : vector<1x128xf32> to vector<1x1x128xf32>
    %46 = vector.broadcast %45 : vector<1x1x128xf32> to vector<1x6x128xf32>
    %47 = arith.mulf %43, %46 : vector<1x6x128xf32>
    %48 = arith.addf %42, %47 : vector<1x6x128xf32>
    %49 = vector.extract_strided_slice %31 {offsets = [0, 2, 0], sizes = [1, 6, 128], strides = [1, 1, 1]} : vector<1x8x128xf32> to vector<1x6x128xf32>
    %50 = vector.extract_strided_slice %32 {offsets = [2, 0], sizes = [1, 128], strides = [1, 1]} : vector<4x128xf32> to vector<1x128xf32>
    %51 = vector.shape_cast %50 : vector<1x128xf32> to vector<1x1x128xf32>
    %52 = vector.broadcast %51 : vector<1x1x128xf32> to vector<1x6x128xf32>
    %53 = arith.mulf %49, %52 : vector<1x6x128xf32>
    %54 = arith.addf %48, %53 : vector<1x6x128xf32>
    %cst_29 = arith.constant 0.000000e+00 : f32
    %55 = vector.broadcast %cst_29 : f32 to vector<1x6x128xf32>
    %56 = arith.cmpf ogt, %54, %55 : vector<1x6x128xf32>
    %cst_30 = arith.constant 1.000000e-01 : f32
    %57 = vector.broadcast %cst_30 : f32 to vector<1x6x128xf32>
    %58 = arith.mulf %57, %54 : vector<1x6x128xf32>
    %59 = arith.select %56, %54, %58 : vector<1x6x128xi1>, vector<1x6x128xf32>
    %c0_31 = arith.constant 0 : index
    %c0_32 = arith.constant 0 : index
    %c0_33 = arith.constant 0 : index
    %60 = vector.load %arg4[%c0_31, %c0_32, %c0_33] : memref<1x6x128xf32, #tpu.memory_space<vmem>>, vector<1x6x128xf32>
    tpu.vector_store %arg4[%c0_31, %c0_32, %c0_33], %59 {strides = array<i32>} : memref<1x6x128xf32, #tpu.memory_space<vmem>>, vector<1x6x128xf32>,
    return
  }
  func.func @transform_0(%arg0: i32) -> (i32, i32, i32, i32) {
    %c0_i32 = arith.constant 0 : i32
    %c0_i32_0 = arith.constant 0 : i32
    %c0_i32_1 = arith.constant 0 : i32
    %c0_i32_2 = arith.constant 0 : i32
    return %arg0, %c0_i32, %c0_i32_0, %c0_i32_1 : i32, i32, i32, i32
  }
  func.func @transform_1(%arg0: i32) -> (i32, i32, i32) {
    %c0_i32 = arith.constant 0 : i32
    %c0_i32_0 = arith.constant 0 : i32
    %c0_i32_1 = arith.constant 0 : i32
    %c0_i32_2 = arith.constant 0 : i32
    return %c0_i32, %c0_i32_0, %c0_i32_1 : i32, i32, i32
  }
  func.func @transform_2(%arg0: i32) -> (i32, i32) {
    %c0_i32 = arith.constant 0 : i32
    %c0_i32_0 = arith.constant 0 : i32
    %c0_i32_1 = arith.constant 0 : i32
    return %c0_i32, %c0_i32_0 : i32, i32
  }
  func.func @transform_3(%arg0: i32) -> (i32, i32, i32) {
    %c0_i32 = arith.constant 0 : i32
    %c0_i32_0 = arith.constant 0 : i32
    %c0_i32_1 = arith.constant 0 : i32
    return %arg0, %c0_i32, %c0_i32_0 : i32, i32, i32
  }
}

</mosaic_0001>

<llo_original>
// kernel: tpu_custom_call.1
$region0: #{tpu_custom_call.1}
  #allocation0 [shape = 'u32[]', space=smem, size = 0x4, offset = 0x4, fixed_abs, tag = 'smem constant byte address 0x4 - core index']
  #allocation1 [shape = 'u32[144,128]{1,0:T(1,128)}', space=vmem, size = 0x12000, scoped, tag = 'internal scratch']
  %s0 = inlined_call_operand.hbm [shape: f32[2,4,8,256], index: 0, kind: input, shape index: {}]
  %s1 = inlined_call_operand.hbm [shape: bf16[4,256,128], index: 1, kind: input, shape index: {}]
  %s2 = inlined_call_operand.vmem [shape: f32[4,128], index: 2, kind: input, shape index: {}]
  %s3 = inlined_call_operand.vmem [shape: f32[2,6,128], index: 3, kind: output, shape index: {}]
  %s4 = sld [smem:[#allocation0]]
  $region53: #{tpu_custom_call.1} parent=0
    _
  %s6 = ssub.s32 1, %s4
  %s7 = scalar_select 0, %s6, %s4
  $region1: #{tpu_custom_call.1} parent=0
    #allocation2 [shape = 'u8[65536]{0}', space=vmem, size = 0x10000, scoped, tag = 'input window, operand 0']
    #allocation3 [shape = 's32[2]{0}', space=sflag, size = 0x8, scoped, tag = 'scoped memory for tpu_custom_call.1']
    #allocation4 [shape = 'u8[262144]{0}', space=vmem, size = 0x40000, scoped, tag = 'input window, operand 1, single buffered']
    #allocation5 [shape = 's32[1]{0}', space=sflag, size = 0x4, scoped, tag = 'scoped memory for tpu_custom_call.1']
    %8 = vsyncpa [#allocation3], 0
    %s9 = scalar_lea.sflag [#allocation3], 1
    %10 = vsyncpa %s9, 0
    %11 = vsyncpa [#allocation5], 0
    loop: start=0, step=1, limit=4
    $region2: #{tpu_custom_call.1} parent=1 // loop_pre_header
      _
    $region3: #{tpu_custom_call.1} parent=1 // loop_header
      %s13 = sphi 0, %s17
      %p14 = scmp.ge.s32.totalorder %s13, 4
      %s23 = sphi 0, %s25
      %s26 = sphi 0, %s23
      %s27 = sphi 0, %s26
      %s43 = sphi 0, %s27
      %s47 = sphi 0, %s47
      %s49 = sphi 0, %s47
      %s50 = sphi 0, %s49
      %s64 = sphi 0, %s50
      %s68 = sphi 0, %s68
      %s70 = sphi 0, %s68
      %s71 = sphi 0, %s70
      %s85 = sphi 0, %s71
      %s91 = sphi 0, %s93
      %s94 = sphi 0, %s91
      %s95 = sphi 0, %s94
      %s111 = sphi 0, %s95
    $region4: #{tpu_custom_call.1} parent=1 // loop_header_branch
      %16 = sbr.rel (%p14) target = $region8
    $region5: #{tpu_custom_call.1} parent=1 // loop_body
      %s18 = ssub.s32 %s13, 1
      %s19 = ssub.s32 %s13, 2
      %s20 = sadd.s32 %s13, 1
      %s21 = ssub.s32 %s13, %s20
      %p22 = scmp.eq.s32.totalorder %s21, 0
      %s24 = sadd.s32 %s23, 1
      %s25 = scalar_select %p22, %s23, %s24
      %p28 = pneg %p22
      %p29 = scmp.eq.s32.totalorder %s13, 1
      %p30 = por %p28, %p29
      %p31 = scmp.ne.s32.totalorder %s23, %s26
      %p32 = scmp.eq.s32.totalorder %s13, 0
      %p33 = por %p31, %p32
      %p34 = scmp.ne.s32.totalorder %s23, %s26
      %p35 = scmp.eq.s32.totalorder %s18, 1
      %p36 = por %p34, %p35
      %p37 = scmp.ne.s32.totalorder %s26, %s27
      %p38 = scmp.eq.s32.totalorder %s18, 0
      %p39 = por %p37, %p38
      %p40 = scmp.ne.s32.totalorder %s26, %s27
      %p41 = scmp.eq.s32.totalorder %s19, 1
      %p42 = por %p40, %p41
      %p44 = scmp.ne.s32.totalorder %s27, %s43
      %p45 = scmp.eq.s32.totalorder %s19, 0
      %p46 = por %p44, %p45
      %s48 = sadd.s32 %s47, 1
      %p51 = scmp.eq.s32.totalorder %s13, 1
      %p52 = scmp.ne.s32.totalorder %s47, %s49
      %p53 = scmp.eq.s32.totalorder %s13, 0
      %p54 = por %p52, %p53
      %p55 = scmp.ne.s32.totalorder %s47, %s49
      %p56 = scmp.eq.s32.totalorder %s18, 1
      %p57 = por %p55, %p56
      %p58 = scmp.ne.s32.totalorder %s49, %s50
      %p59 = scmp.eq.s32.totalorder %s18, 0
      %p60 = por %p58, %p59
      %p61 = scmp.ne.s32.totalorder %s49, %s50
      %p62 = scmp.eq.s32.totalorder %s19, 1
      %p63 = por %p61, %p62
      %p65 = scmp.ne.s32.totalorder %s50, %s64
      %p66 = scmp.eq.s32.totalorder %s19, 0
      %p67 = por %p65, %p66
      %s69 = sadd.s32 %s68, 1
      %p72 = scmp.eq.s32.totalorder %s13, 1
      %p73 = scmp.ne.s32.totalorder %s68, %s70
      %p74 = scmp.eq.s32.totalorder %s13, 0
      %p75 = por %p73, %p74
      %p76 = scmp.ne.s32.totalorder %s68, %s70
      %p77 = scmp.eq.s32.totalorder %s18, 1
      %p78 = por %p76, %p77
      %p79 = scmp.ne.s32.totalorder %s70, %s71
      %p80 = scmp.eq.s32.totalorder %s18, 0
      %p81 = por %p79, %p80
      %p82 = scmp.ne.s32.totalorder %s70, %s71
      %p83 = scmp.eq.s32.totalorder %s19, 1
      %p84 = por %p82, %p83
      %p86 = scmp.ne.s32.totalorder %s71, %s85
      %p87 = scmp.eq.s32.totalorder %s19, 0
      %p88 = por %p86, %p87
      %s89 = ssub.s32 %s13, %s20
      %p90 = scmp.eq.s32.totalorder %s89, 0
      %s92 = sadd.s32 %s91, 1
      %s93 = scalar_select %p90, %s91, %s92
      %p96 = pneg %p90
      %p97 = scmp.eq.s32.totalorder %s13, 1
      %p98 = por %p96, %p97
      %p99 = scmp.ne.s32.totalorder %s91, %s94
      %p100 = scmp.eq.s32.totalorder %s13, 0
      %p101 = por %p99, %p100
      %p102 = scmp.ne.s32.totalorder %s91, %s94
      %p103 = scmp.eq.s32.totalorder %s18, 1
      %p104 = por %p102, %p103
      %p105 = scmp.ne.s32.totalorder %s94, %s95
      %p106 = scmp.eq.s32.totalorder %s18, 0
      %p107 = por %p105, %p106
      %p108 = scmp.ne.s32.totalorder %s94, %s95
      %p109 = scmp.eq.s32.totalorder %s19, 1
      %p110 = por %p108, %p109
      %p112 = scmp.ne.s32.totalorder %s95, %s111
      %p113 = scmp.eq.s32.totalorder %s19, 0
      %p114 = por %p112, %p113
      %p115 = scmp.le.s32.totalorder 1, %s13
      %p116 = scmp.lt.s32.totalorder %s13, 3
      %p117 = pnand %p115, %p116
      %p118 = pneg %p117
      // Predicated region
      $region9: #{tpu_custom_call.1} parent=5 // pred_check
        _
      $region10: #{tpu_custom_call.1} parent=5 // pred_check_branch
        %120 = sbr.rel (%p117) target = $region12
      $region11: #{tpu_custom_call.1} parent=5 // pred_region
        %s121 = ssub.s32 %s13, 1
        // Predicated region
        $region13: #{tpu_custom_call.1} parent=11 // pred_check
          %p122 = pneg %p60
        $region14: #{tpu_custom_call.1} parent=11 // pred_check_branch
          %124 = sbr.rel (%p122) target = $region16
        $region15: #{tpu_custom_call.1} parent=11 // pred_region
          %s126 = ssub.s32 8192, 8192
          %127 = vsyncadd [#allocation5], %s126
          %s128 = sshll.u32 [#allocation4], 4
          %s129 = int_to_ptr.vmem [resolvable:$true] %s128
          %134 = dma.hbm_to_vmem [thread:$0]  %s1, 8192, %s129, [#allocation5], 64, 64, 4
        $region16: #{tpu_custom_call.1} parent=11 // pred_fallthru
          _
        // Predicated region
        $region17: #{tpu_custom_call.1} parent=11 // pred_check
          %p135 = pneg %p81
        $region18: #{tpu_custom_call.1} parent=11 // pred_check_branch
          %137 = sbr.rel (%p135) target = $region20
        $region19: #{tpu_custom_call.1} parent=11 // pred_region
          _
        $region20: #{tpu_custom_call.1} parent=11 // pred_fallthru
          _
      $region12: #{tpu_custom_call.1} parent=5 // pred_fallthru
        _
      %p138 = scmp.lt.s32.totalorder %s13, 2
      // Predicated region
      $region21: #{tpu_custom_call.1} parent=5 // pred_check
        %p139 = pneg %p138
      $region22: #{tpu_custom_call.1} parent=5 // pred_check_branch
        %141 = sbr.rel (%p139) target = $region24
      $region23: #{tpu_custom_call.1} parent=5 // pred_region
        // Predicated region
        $region25: #{tpu_custom_call.1} parent=23 // pred_check
          %p142 = pneg %p33
        $region26: #{tpu_custom_call.1} parent=23 // pred_check_branch
          %144 = sbr.rel (%p142) target = $region28
        $region27: #{tpu_custom_call.1} parent=23 // pred_region
          %s145 = sand.u32 %s23, 1
          %s146 = scalar_lea.sflag [#allocation3], %s145
          %s147 = sand.u32 %s23, 1
          %s148 = smul.addr %s147, 64
          %s149 = scalar_lea.vmem [#allocation2], %s148
          %s151 = ssub.s32 1024, 1024
          %152 = vsyncadd %s146, %s151
          %s153 = smul.addr %s13, 8
          %s154 = smul.addr %s153, 128
          %s155 = scalar_lea.hbm %s0, %s154
          %s156 = sshll.u32 %s149, 4
          %s157 = int_to_ptr.vmem [resolvable:$true] %s156
          %162 = dma.hbm_to_vmem [thread:$0]  %s155, 1024, %s157, %s146, 256, 256, 16
        $region28: #{tpu_custom_call.1} parent=23 // pred_fallthru
          _
      $region24: #{tpu_custom_call.1} parent=5 // pred_fallthru
        _
      %p163 = scmp.le.s32.totalorder 1, %s13
      %p164 = scmp.lt.s32.totalorder %s13, 3
      %p165 = pnand %p163, %p164
      %p166 = pneg %p165
      // Predicated region
      $region29: #{tpu_custom_call.1} parent=5 // pred_check
        _
      $region30: #{tpu_custom_call.1} parent=5 // pred_check_branch
        %168 = sbr.rel (%p165) target = $region32
      $region31: #{tpu_custom_call.1} parent=5 // pred_region
        %s169 = ssub.s32 %s13, 1
        %s170 = sand.u32 %s26, 1
        %s171 = scalar_lea.sflag [#allocation3], %s170
        %s172 = sand.u32 %s26, 1
        %s173 = smul.addr %s172, 64
        %s174 = scalar_lea.vmem [#allocation2], %s173
        // Predicated region
        $region33: #{tpu_custom_call.1} parent=31 // pred_check
          %p175 = pneg %p39
        $region34: #{tpu_custom_call.1} parent=31 // pred_check_branch
          %177 = sbr.rel (%p175) target = $region36
        $region35: #{tpu_custom_call.1} parent=31 // pred_region
          %178 = dma.done %s171, 1024
        $region36: #{tpu_custom_call.1} parent=31 // pred_fallthru
          _
        // Predicated region
        $region37: #{tpu_custom_call.1} parent=31 // pred_check
          %p179 = pneg %p60
        $region38: #{tpu_custom_call.1} parent=31 // pred_check_branch
          %181 = sbr.rel (%p179) target = $region40
        $region39: #{tpu_custom_call.1} parent=31 // pred_region
          %182 = dma.done [#allocation5], 8192
        $region40: #{tpu_custom_call.1} parent=31 // pred_fallthru
          _
        %s183 = sand.u32 %s26, 1
        %s184 = scalar_lea.sflag [#allocation3], %s183
        %s185 = sand.u32 %s26, 1
        %s186 = smul.addr %s185, 64
        %s187 = scalar_lea.vmem [#allocation2], %s186
        %p188 = pneg %p39
        %p189 = pneg %p36
        %p190 = pneg %p60
        %p191 = pneg %p57
        %p192 = pneg %p81
        %p193 = pneg %p78
        %p194 = pneg %p107
        %p195 = pneg %p104
        %p196 = scmp.lt.s32.totalorder %s18, 1
        %s197 = scalar_select %p196, %s18, 1
        %s198 = smul.addr %s197, 8
        %s199 = scalar_lea.vmem %s3, %s198
        %p200 = scmp.lt.s32.totalorder %s18, 1
        %s201 = scalar_select %p200, %s18, 1
        %s202 = smul.addr %s201, 8
        %s203 = scalar_lea.vmem %s3, %s202
        %v205 = vld [vmem:[%s174] sm:$0xff]
        %v206 = vld [vmem:[%s174 + $0x8] sm:$0xff]
        %v207 = vpack.c.bf16 %v205, %v205
        %v208 = vpack.c.bf16 %v206, %v206
        %v209 = vld [vmem:[#allocation4] sm:$0xf]
        %v210 = vld [vmem:[#allocation4 + $0x4] sm:$0xf]
        %v211 = vld [vmem:[#allocation4 + $0x8] sm:$0xf]
        %v212 = vld [vmem:[#allocation4 + $0xc] sm:$0xf]
        %v213 = vld [vmem:[#allocation4 + $0x10] sm:$0xf]
        %v214 = vld [vmem:[#allocation4 + $0x14] sm:$0xf]
        %v215 = vld [vmem:[#allocation4 + $0x18] sm:$0xf]
        %v216 = vld [vmem:[#allocation4 + $0x1c] sm:$0xf]
        %v217 = vld [vmem:[#allocation4 + $0x20] sm:$0xf]
        %v218 = vld [vmem:[#allocation4 + $0x24] sm:$0xf]
        %v219 = vld [vmem:[#allocation4 + $0x28] sm:$0xf]
        %v220 = vld [vmem:[#allocation4 + $0x2c] sm:$0xf]
        %v221 = vld [vmem:[#allocation4 + $0x30] sm:$0xf]
        %v222 = vld [vmem:[#allocation4 + $0x34] sm:$0xf]
        %v223 = vld [vmem:[#allocation4 + $0x38] sm:$0xf]
        %v224 = vld [vmem:[#allocation4 + $0x3c] sm:$0xf]
        %v225 = vld [vmem:[#allocation4 + $0x40] sm:$0xf]
        %v226 = vld [vmem:[#allocation4 + $0x44] sm:$0xf]
        %v227 = vld [vmem:[#allocation4 + $0x48] sm:$0xf]
        %v228 = vld [vmem:[#allocation4 + $0x4c] sm:$0xf]
        %v229 = vld [vmem:[#allocation4 + $0x50] sm:$0xf]
        %v230 = vld [vmem:[#allocation4 + $0x54] sm:$0xf]
        %v231 = vld [vmem:[#allocation4 + $0x58] sm:$0xf]
        %v232 = vld [vmem:[#allocation4 + $0x5c] sm:$0xf]
        %v233 = vld [vmem:[#allocation4 + $0x60] sm:$0xf]
        %v234 = vld [vmem:[#allocation4 + $0x64] sm:$0xf]
        %v235 = vld [vmem:[#allocation4 + $0x68] sm:$0xf]
        %v236 = vld [vmem:[#allocation4 + $0x6c] sm:$0xf]
        %v237 = vld [vmem:[#allocation4 + $0x70] sm:$0xf]
        %v238 = vld [vmem:[#allocation4 + $0x74] sm:$0xf]
        %v239 = vld [vmem:[#allocation4 + $0x78] sm:$0xf]
        %v240 = vld [vmem:[#allocation4 + $0x7c] sm:$0xf]
        %s241 = scalar_lea.vmem %s174, 16 [#allocation2]
        %v242 = vld [vmem:[%s241] sm:$0xff]
        %v243 = vld [vmem:[%s241 + $0x8] sm:$0xff]
        %v244 = vpack.c.bf16 %v242, %v242
        %v245 = vpack.c.bf16 %v243, %v243
        %s246 = scalar_lea.vmem [#allocation4], 128
        %v247 = vld [vmem:[%s246] sm:$0xf]
        %v248 = vld [vmem:[%s246 + $0x4] sm:$0xf]
        %v249 = vld [vmem:[%s246 + $0x8] sm:$0xf]
        %v250 = vld [vmem:[%s246 + $0xc] sm:$0xf]
        %v251 = vld [vmem:[%s246 + $0x10] sm:$0xf]
        %v252 = vld [vmem:[%s246 + $0x14] sm:$0xf]
        %v253 = vld [vmem:[%s246 + $0x18] sm:$0xf]
        %v254 = vld [vmem:[%s246 + $0x1c] sm:$0xf]
        %v255 = vld [vmem:[%s246 + $0x20] sm:$0xf]
        %v256 = vld [vmem:[%s246 + $0x24] sm:$0xf]
        %v257 = vld [vmem:[%s246 + $0x28] sm:$0xf]
        %v258 = vld [vmem:[%s246 + $0x2c] sm:$0xf]
        %v259 = vld [vmem:[%s246 + $0x30] sm:$0xf]
        %v260 = vld [vmem:[%s246 + $0x34] sm:$0xf]
        %v261 = vld [vmem:[%s246 + $0x38] sm:$0xf]
        %v262 = vld [vmem:[%s246 + $0x3c] sm:$0xf]
        %v263 = vld [vmem:[%s246 + $0x40] sm:$0xf]
        %v264 = vld [vmem:[%s246 + $0x44] sm:$0xf]
        %v265 = vld [vmem:[%s246 + $0x48] sm:$0xf]
        %v266 = vld [vmem:[%s246 + $0x4c] sm:$0xf]
        %v267 = vld [vmem:[%s246 + $0x50] sm:$0xf]
        %v268 = vld [vmem:[%s246 + $0x54] sm:$0xf]
        %v269 = vld [vmem:[%s246 + $0x58] sm:$0xf]
        %v270 = vld [vmem:[%s246 + $0x5c] sm:$0xf]
        %v271 = vld [vmem:[%s246 + $0x60] sm:$0xf]
        %v272 = vld [vmem:[%s246 + $0x64] sm:$0xf]
        %v273 = vld [vmem:[%s246 + $0x68] sm:$0xf]
        %v274 = vld [vmem:[%s246 + $0x6c] sm:$0xf]
        %v275 = vld [vmem:[%s246 + $0x70] sm:$0xf]
        %v276 = vld [vmem:[%s246 + $0x74] sm:$0xf]
        %v277 = vld [vmem:[%s246 + $0x78] sm:$0xf]
        %v278 = vld [vmem:[%s246 + $0x7c] sm:$0xf]
        %v311 = vunpack.c.l.b16 %v247
        %v312 = vunpack.c.l.b16 %v248
        %v313 = vunpack.c.l.b16 %v249
        %v314 = vunpack.c.l.b16 %v250
        %v315 = vunpack.c.l.b16 %v251
        %v316 = vunpack.c.l.b16 %v252
        %v317 = vunpack.c.l.b16 %v253
        %v318 = vunpack.c.l.b16 %v254
        %v319 = vunpack.c.l.b16 %v255
        %v320 = vunpack.c.l.b16 %v256
        %v321 = vunpack.c.l.b16 %v257
        %v322 = vunpack.c.l.b16 %v258
        %v323 = vunpack.c.l.b16 %v259
        %v324 = vunpack.c.l.b16 %v260
        %v325 = vunpack.c.l.b16 %v261
        %v326 = vunpack.c.l.b16 %v262
        %v327 = vunpack.c.l.b16 %v263
        %v328 = vunpack.c.l.b16 %v264
        %v329 = vunpack.c.l.b16 %v265
        %v330 = vunpack.c.l.b16 %v266
        %v331 = vunpack.c.l.b16 %v267
        %v332 = vunpack.c.l.b16 %v268
        %v333 = vunpack.c.l.b16 %v269
        %v334 = vunpack.c.l.b16 %v270
        %v335 = vunpack.c.l.b16 %v271
        %v336 = vunpack.c.l.b16 %v272
        %v337 = vunpack.c.l.b16 %v273
        %v338 = vunpack.c.l.b16 %v274
        %v339 = vunpack.c.l.b16 %v275
        %v340 = vunpack.c.l.b16 %v276
        %v341 = vunpack.c.l.b16 %v277
        %v342 = vunpack.c.l.b16 %v278
        %v343 = vpack.c.b16 %v312, %v311
        %v344 = vpack.c.b16 %v314, %v313
        %v345 = vpack.c.b16 %v316, %v315
        %v346 = vpack.c.b16 %v318, %v317
        %v347 = vpack.c.b16 %v320, %v319
        %v348 = vpack.c.b16 %v322, %v321
        %v349 = vpack.c.b16 %v324, %v323
        %v350 = vpack.c.b16 %v326, %v325
        %v351 = vpack.c.b16 %v328, %v327
        %v352 = vpack.c.b16 %v330, %v329
        %v353 = vpack.c.b16 %v332, %v331
        %v354 = vpack.c.b16 %v334, %v333
        %v355 = vpack.c.b16 %v336, %v335
        %v356 = vpack.c.b16 %v338, %v337
        %v357 = vpack.c.b16 %v340, %v339
        %v358 = vpack.c.b16 %v342, %v341
        %375 = vmatprep.subr.bf16.mxu0 0
        %376 = vmatpush1.bf16.msra.mxu0 %v343
        %377 = vmatprep.subr.bf16.mxu0 0
        %378 = vmatpush1.bf16.msra.mxu0 %v344
        %379 = vmatprep.subr.bf16.mxu0 0
        %380 = vmatpush1.bf16.msra.mxu0 %v345
        %381 = vmatprep.subr.bf16.mxu0 0
        %382 = vmatpush1.bf16.msra.mxu0 %v346
        %383 = vmatprep.subr.bf16.mxu0 0
        %384 = vmatpush1.bf16.msra.mxu0 %v347
        %385 = vmatprep.subr.bf16.mxu0 0
        %386 = vmatpush1.bf16.msra.mxu0 %v348
        %387 = vmatprep.subr.bf16.mxu0 0
        %388 = vmatpush1.bf16.msra.mxu0 %v349
        %389 = vmatprep.subr.bf16.mxu0 0
        %390 = vmatpush1.bf16.msra.mxu0 %v350
        %391 = vmatprep.subr.bf16.mxu0 0
        %392 = vmatpush1.bf16.msra.mxu0 %v351
        %393 = vmatprep.subr.bf16.mxu0 0
        %394 = vmatpush1.bf16.msra.mxu0 %v352
        %395 = vmatprep.subr.bf16.mxu0 0
        %396 = vmatpush1.bf16.msra.mxu0 %v353
        %397 = vmatprep.subr.bf16.mxu0 0
        %398 = vmatpush1.bf16.msra.mxu0 %v354
        %399 = vmatprep.subr.bf16.mxu0 0
        %400 = vmatpush1.bf16.msra.mxu0 %v355
        %401 = vmatprep.subr.bf16.mxu0 0
        %402 = vmatpush1.bf16.msra.mxu0 %v356
        %403 = vmatprep.subr.bf16.mxu0 0
        %404 = vmatpush1.bf16.msra.mxu0 %v357
        %405 = vmatprep.subr.bf16.mxu0 0
        %406 = vmatpush1.bf16.msra.mxu0 %v358
        %407 = vmatprep.mubr.bf16.mxu0 %v245
        %408 = vmatmul.mubr.bf16.gmra.mrb[0].mxu0 %v244
        %v409 = vpop.f32.mrb[0].mxu0
        %v410 = vadd.f32 0.0, %v409
        %v411 = vpop.f32.mrb[0].mxu0
        %v412 = vpop.f32.mrb[0].mxu0
        %v413 = vpop.f32.mrb[0].mxu0
        %414 = vdwg.mxu0
        %v447 = vunpack.c.l.b16 %v209
        %v448 = vunpack.c.l.b16 %v210
        %v449 = vunpack.c.l.b16 %v211
        %v450 = vunpack.c.l.b16 %v212
        %v451 = vunpack.c.l.b16 %v213
        %v452 = vunpack.c.l.b16 %v214
        %v453 = vunpack.c.l.b16 %v215
        %v454 = vunpack.c.l.b16 %v216
        %v455 = vunpack.c.l.b16 %v217
        %v456 = vunpack.c.l.b16 %v218
        %v457 = vunpack.c.l.b16 %v219
        %v458 = vunpack.c.l.b16 %v220
        %v459 = vunpack.c.l.b16 %v221
        %v460 = vunpack.c.l.b16 %v222
        %v461 = vunpack.c.l.b16 %v223
        %v462 = vunpack.c.l.b16 %v224
        %v463 = vunpack.c.l.b16 %v225
        %v464 = vunpack.c.l.b16 %v226
        %v465 = vunpack.c.l.b16 %v227
        %v466 = vunpack.c.l.b16 %v228
        %v467 = vunpack.c.l.b16 %v229
        %v468 = vunpack.c.l.b16 %v230
        %v469 = vunpack.c.l.b16 %v231
        %v470 = vunpack.c.l.b16 %v232
        %v471 = vunpack.c.l.b16 %v233
        %v472 = vunpack.c.l.b16 %v234
        %v473 = vunpack.c.l.b16 %v235
        %v474 = vunpack.c.l.b16 %v236
        %v475 = vunpack.c.l.b16 %v237
        %v476 = vunpack.c.l.b16 %v238
        %v477 = vunpack.c.l.b16 %v239
        %v478 = vunpack.c.l.b16 %v240
        %v479 = vpack.c.b16 %v448, %v447
        %v480 = vpack.c.b16 %v450, %v449
        %v481 = vpack.c.b16 %v452, %v451
        %v482 = vpack.c.b16 %v454, %v453
        %v483 = vpack.c.b16 %v456, %v455
        %v484 = vpack.c.b16 %v458, %v457
        %v485 = vpack.c.b16 %v460, %v459
        %v486 = vpack.c.b16 %v462, %v461
        %v487 = vpack.c.b16 %v464, %v463
        %v488 = vpack.c.b16 %v466, %v465
        %v489 = vpack.c.b16 %v468, %v467
        %v490 = vpack.c.b16 %v470, %v469
        %v491 = vpack.c.b16 %v472, %v471
        %v492 = vpack.c.b16 %v474, %v473
        %v493 = vpack.c.b16 %v476, %v475
        %v494 = vpack.c.b16 %v478, %v477
        %511 = vmatprep.subr.bf16.mxu0 0
        %512 = vmatpush1.bf16.msra.mxu0 %v479
        %513 = vmatprep.subr.bf16.mxu0 0
        %514 = vmatpush1.bf16.msra.mxu0 %v480
        %515 = vmatprep.subr.bf16.mxu0 0
        %516 = vmatpush1.bf16.msra.mxu0 %v481
        %517 = vmatprep.subr.bf16.mxu0 0
        %518 = vmatpush1.bf16.msra.mxu0 %v482
        %519 = vmatprep.subr.bf16.mxu0 0
        %520 = vmatpush1.bf16.msra.mxu0 %v483
        %521 = vmatprep.subr.bf16.mxu0 0
        %522 = vmatpush1.bf16.msra.mxu0 %v484
        %523 = vmatprep.subr.bf16.mxu0 0
        %524 = vmatpush1.bf16.msra.mxu0 %v485
        %525 = vmatprep.subr.bf16.mxu0 0
        %526 = vmatpush1.bf16.msra.mxu0 %v486
        %527 = vmatprep.subr.bf16.mxu0 0
        %528 = vmatpush1.bf16.msra.mxu0 %v487
        %529 = vmatprep.subr.bf16.mxu0 0
        %530 = vmatpush1.bf16.msra.mxu0 %v488
        %531 = vmatprep.subr.bf16.mxu0 0
        %532 = vmatpush1.bf16.msra.mxu0 %v489
        %533 = vmatprep.subr.bf16.mxu0 0
        %534 = vmatpush1.bf16.msra.mxu0 %v490
        %535 = vmatprep.subr.bf16.mxu0 0
        %536 = vmatpush1.bf16.msra.mxu0 %v491
        %537 = vmatprep.subr.bf16.mxu0 0
        %538 = vmatpush1.bf16.msra.mxu0 %v492
        %539 = vmatprep.subr.bf16.mxu0 0
        %540 = vmatpush1.bf16.msra.mxu0 %v493
        %541 = vmatprep.subr.bf16.mxu0 0
        %542 = vmatpush1.bf16.msra.mxu0 %v494
        %543 = vmatprep.mubr.bf16.mxu0 %v208
        %544 = vmatmul.mubr.bf16.gmra.mrb[0].mxu0 %v207
        %v545 = vpop.f32.mrb[0].mxu0
        %v546 = vadd.f32 %v410, %v545
        %v547 = vpop.f32.mrb[0].mxu0
        %v548 = vpop.f32.mrb[0].mxu0
        %v549 = vpop.f32.mrb[0].mxu0
        %550 = vdwg.mxu0
        %s551 = scalar_lea.vmem %s174, 32 [#allocation2]
        %v552 = vld [vmem:[%s551] sm:$0xff]
        %v553 = vld [vmem:[%s551 + $0x8] sm:$0xff]
        %v554 = vpack.c.bf16 %v552, %v552
        %v555 = vpack.c.bf16 %v553, %v553
        %s556 = scalar_lea.vmem [#allocation4], 256
        %v557 = vld [vmem:[%s556] sm:$0xf]
        %v558 = vld [vmem:[%s556 + $0x4] sm:$0xf]
        %v559 = vld [vmem:[%s556 + $0x8] sm:$0xf]
        %v560 = vld [vmem:[%s556 + $0xc] sm:$0xf]
        %v561 = vld [vmem:[%s556 + $0x10] sm:$0xf]
        %v562 = vld [vmem:[%s556 + $0x14] sm:$0xf]
        %v563 = vld [vmem:[%s556 + $0x18] sm:$0xf]
        %v564 = vld [vmem:[%s556 + $0x1c] sm:$0xf]
        %v565 = vld [vmem:[%s556 + $0x20] sm:$0xf]
        %v566 = vld [vmem:[%s556 + $0x24] sm:$0xf]
        %v567 = vld [vmem:[%s556 + $0x28] sm:$0xf]
        %v568 = vld [vmem:[%s556 + $0x2c] sm:$0xf]
        %v569 = vld [vmem:[%s556 + $0x30] sm:$0xf]
        %v570 = vld [vmem:[%s556 + $0x34] sm:$0xf]
        %v571 = vld [vmem:[%s556 + $0x38] sm:$0xf]
        %v572 = vld [vmem:[%s556 + $0x3c] sm:$0xf]
        %v573 = vld [vmem:[%s556 + $0x40] sm:$0xf]
        %v574 = vld [vmem:[%s556 + $0x44] sm:$0xf]
        %v575 = vld [vmem:[%s556 + $0x48] sm:$0xf]
        %v576 = vld [vmem:[%s556 + $0x4c] sm:$0xf]
        %v577 = vld [vmem:[%s556 + $0x50] sm:$0xf]
        %v578 = vld [vmem:[%s556 + $0x54] sm:$0xf]
        %v579 = vld [vmem:[%s556 + $0x58] sm:$0xf]
        %v580 = vld [vmem:[%s556 + $0x5c] sm:$0xf]
        %v581 = vld [vmem:[%s556 + $0x60] sm:$0xf]
        %v582 = vld [vmem:[%s556 + $0x64] sm:$0xf]
        %v583 = vld [vmem:[%s556 + $0x68] sm:$0xf]
        %v584 = vld [vmem:[%s556 + $0x6c] sm:$0xf]
        %v585 = vld [vmem:[%s556 + $0x70] sm:$0xf]
        %v586 = vld [vmem:[%s556 + $0x74] sm:$0xf]
        %v587 = vld [vmem:[%s556 + $0x78] sm:$0xf]
        %v588 = vld [vmem:[%s556 + $0x7c] sm:$0xf]
        %v621 = vunpack.c.l.b16 %v557
        %v622 = vunpack.c.l.b16 %v558
        %v623 = vunpack.c.l.b16 %v559
        %v624 = vunpack.c.l.b16 %v560
        %v625 = vunpack.c.l.b16 %v561
        %v626 = vunpack.c.l.b16 %v562
        %v627 = vunpack.c.l.b16 %v563
        %v628 = vunpack.c.l.b16 %v564
        %v629 = vunpack.c.l.b16 %v565
        %v630 = vunpack.c.l.b16 %v566
        %v631 = vunpack.c.l.b16 %v567
        %v632 = vunpack.c.l.b16 %v568
        %v633 = vunpack.c.l.b16 %v569
        %v634 = vunpack.c.l.b16 %v570
        %v635 = vunpack.c.l.b16 %v571
        %v636 = vunpack.c.l.b16 %v572
        %v637 = vunpack.c.l.b16 %v573
        %v638 = vunpack.c.l.b16 %v574
        %v639 = vunpack.c.l.b16 %v575
        %v640 = vunpack.c.l.b16 %v576
        %v641 = vunpack.c.l.b16 %v577
        %v642 = vunpack.c.l.b16 %v578
        %v643 = vunpack.c.l.b16 %v579
        %v644 = vunpack.c.l.b16 %v580
        %v645 = vunpack.c.l.b16 %v581
        %v646 = vunpack.c.l.b16 %v582
        %v647 = vunpack.c.l.b16 %v583
        %v648 = vunpack.c.l.b16 %v584
        %v649 = vunpack.c.l.b16 %v585
        %v650 = vunpack.c.l.b16 %v586
        %v651 = vunpack.c.l.b16 %v587
        %v652 = vunpack.c.l.b16 %v588
        %v653 = vpack.c.b16 %v622, %v621
        %v654 = vpack.c.b16 %v624, %v623
        %v655 = vpack.c.b16 %v626, %v625
        %v656 = vpack.c.b16 %v628, %v627
        %v657 = vpack.c.b16 %v630, %v629
        %v658 = vpack.c.b16 %v632, %v631
        %v659 = vpack.c.b16 %v634, %v633
        %v660 = vpack.c.b16 %v636, %v635
        %v661 = vpack.c.b16 %v638, %v637
        %v662 = vpack.c.b16 %v640, %v639
        %v663 = vpack.c.b16 %v642, %v641
        %v664 = vpack.c.b16 %v644, %v643
        %v665 = vpack.c.b16 %v646, %v645
        %v666 = vpack.c.b16 %v648, %v647
        %v667 = vpack.c.b16 %v650, %v649
        %v668 = vpack.c.b16 %v652, %v651
        %685 = vmatprep.subr.bf16.mxu0 0
        %686 = vmatpush1.bf16.msra.mxu0 %v653
        %687 = vmatprep.subr.bf16.mxu0 0
        %688 = vmatpush1.bf16.msra.mxu0 %v654
        %689 = vmatprep.subr.bf16.mxu0 0
        %690 = vmatpush1.bf16.msra.mxu0 %v655
        %691 = vmatprep.subr.bf16.mxu0 0
        %692 = vmatpush1.bf16.msra.mxu0 %v656
        %693 = vmatprep.subr.bf16.mxu0 0
        %694 = vmatpush1.bf16.msra.mxu0 %v657
        %695 = vmatprep.subr.bf16.mxu0 0
        %696 = vmatpush1.bf16.msra.mxu0 %v658
        %697 = vmatprep.subr.bf16.mxu0 0
        %698 = vmatpush1.bf16.msra.mxu0 %v659
        %699 = vmatprep.subr.bf16.mxu0 0
        %700 = vmatpush1.bf16.msra.mxu0 %v660
        %701 = vmatprep.subr.bf16.mxu0 0
        %702 = vmatpush1.bf16.msra.mxu0 %v661
        %703 = vmatprep.subr.bf16.mxu0 0
        %704 = vmatpush1.bf16.msra.mxu0 %v662
        %705 = vmatprep.subr.bf16.mxu0 0
        %706 = vmatpush1.bf16.msra.mxu0 %v663
        %707 = vmatprep.subr.bf16.mxu0 0
        %708 = vmatpush1.bf16.msra.mxu0 %v664
        %709 = vmatprep.subr.bf16.mxu0 0
        %710 = vmatpush1.bf16.msra.mxu0 %v665
        %711 = vmatprep.subr.bf16.mxu0 0
        %712 = vmatpush1.bf16.msra.mxu0 %v666
        %713 = vmatprep.subr.bf16.mxu0 0
        %714 = vmatpush1.bf16.msra.mxu0 %v667
        %715 = vmatprep.subr.bf16.mxu0 0
        %716 = vmatpush1.bf16.msra.mxu0 %v668
        %717 = vmatprep.mubr.bf16.mxu0 %v555
        %718 = vmatmul.mubr.bf16.gmra.mrb[0].mxu0 %v554
        %v719 = vpop.f32.mrb[0].mxu0
        %v720 = vadd.f32 0.0, %v719
        %v721 = vpop.f32.mrb[0].mxu0
        %v722 = vpop.f32.mrb[0].mxu0
        %v723 = vpop.f32.mrb[0].mxu0
        %724 = vdwg.mxu0
        %v725 = vadd.f32 %v546, %v720
        %s726 = scalar_lea.vmem %s174, 48 [#allocation2]
        %v727 = vld [vmem:[%s726] sm:$0xff]
        %v728 = vld [vmem:[%s726 + $0x8] sm:$0xff]
        %v729 = vpack.c.bf16 %v727, %v727
        %v730 = vpack.c.bf16 %v728, %v728
        %s731 = scalar_lea.vmem [#allocation4], 384
        %v732 = vld [vmem:[%s731] sm:$0xf]
        %v733 = vld [vmem:[%s731 + $0x4] sm:$0xf]
        %v734 = vld [vmem:[%s731 + $0x8] sm:$0xf]
        %v735 = vld [vmem:[%s731 + $0xc] sm:$0xf]
        %v736 = vld [vmem:[%s731 + $0x10] sm:$0xf]
        %v737 = vld [vmem:[%s731 + $0x14] sm:$0xf]
        %v738 = vld [vmem:[%s731 + $0x18] sm:$0xf]
        %v739 = vld [vmem:[%s731 + $0x1c] sm:$0xf]
        %v740 = vld [vmem:[%s731 + $0x20] sm:$0xf]
        %v741 = vld [vmem:[%s731 + $0x24] sm:$0xf]
        %v742 = vld [vmem:[%s731 + $0x28] sm:$0xf]
        %v743 = vld [vmem:[%s731 + $0x2c] sm:$0xf]
        %v744 = vld [vmem:[%s731 + $0x30] sm:$0xf]
        %v745 = vld [vmem:[%s731 + $0x34] sm:$0xf]
        %v746 = vld [vmem:[%s731 + $0x38] sm:$0xf]
        %v747 = vld [vmem:[%s731 + $0x3c] sm:$0xf]
        %v748 = vld [vmem:[%s731 + $0x40] sm:$0xf]
        %v749 = vld [vmem:[%s731 + $0x44] sm:$0xf]
        %v750 = vld [vmem:[%s731 + $0x48] sm:$0xf]
        %v751 = vld [vmem:[%s731 + $0x4c] sm:$0xf]
        %v752 = vld [vmem:[%s731 + $0x50] sm:$0xf]
        %v753 = vld [vmem:[%s731 + $0x54] sm:$0xf]
        %v754 = vld [vmem:[%s731 + $0x58] sm:$0xf]
        %v755 = vld [vmem:[%s731 + $0x5c] sm:$0xf]
        %v756 = vld [vmem:[%s731 + $0x60] sm:$0xf]
        %v757 = vld [vmem:[%s731 + $0x64] sm:$0xf]
        %v758 = vld [vmem:[%s731 + $0x68] sm:$0xf]
        %v759 = vld [vmem:[%s731 + $0x6c] sm:$0xf]
        %v760 = vld [vmem:[%s731 + $0x70] sm:$0xf]
        %v761 = vld [vmem:[%s731 + $0x74] sm:$0xf]
        %v762 = vld [vmem:[%s731 + $0x78] sm:$0xf]
        %v763 = vld [vmem:[%s731 + $0x7c] sm:$0xf]
        %v796 = vunpack.c.l.b16 %v732
        %v797 = vunpack.c.l.b16 %v733
        %v798 = vunpack.c.l.b16 %v734
        %v799 = vunpack.c.l.b16 %v735
        %v800 = vunpack.c.l.b16 %v736
        %v801 = vunpack.c.l.b16 %v737
        %v802 = vunpack.c.l.b16 %v738
        %v803 = vunpack.c.l.b16 %v739
        %v804 = vunpack.c.l.b16 %v740
        %v805 = vunpack.c.l.b16 %v741
        %v806 = vunpack.c.l.b16 %v742
        %v807 = vunpack.c.l.b16 %v743
        %v808 = vunpack.c.l.b16 %v744
        %v809 = vunpack.c.l.b16 %v745
        %v810 = vunpack.c.l.b16 %v746
        %v811 = vunpack.c.l.b16 %v747
        %v812 = vunpack.c.l.b16 %v748
        %v813 = vunpack.c.l.b16 %v749
        %v814 = vunpack.c.l.b16 %v750
        %v815 = vunpack.c.l.b16 %v751
        %v816 = vunpack.c.l.b16 %v752
        %v817 = vunpack.c.l.b16 %v753
        %v818 = vunpack.c.l.b16 %v754
        %v819 = vunpack.c.l.b16 %v755
        %v820 = vunpack.c.l.b16 %v756
        %v821 = vunpack.c.l.b16 %v757
        %v822 = vunpack.c.l.b16 %v758
        %v823 = vunpack.c.l.b16 %v759
        %v824 = vunpack.c.l.b16 %v760
        %v825 = vunpack.c.l.b16 %v761
        %v826 = vunpack.c.l.b16 %v762
        %v827 = vunpack.c.l.b16 %v763
        %v828 = vpack.c.b16 %v797, %v796
        %v829 = vpack.c.b16 %v799, %v798
        %v830 = vpack.c.b16 %v801, %v800
        %v831 = vpack.c.b16 %v803, %v802
        %v832 = vpack.c.b16 %v805, %v804
        %v833 = vpack.c.b16 %v807, %v806
        %v834 = vpack.c.b16 %v809, %v808
        %v835 = vpack.c.b16 %v811, %v810
        %v836 = vpack.c.b16 %v813, %v812
        %v837 = vpack.c.b16 %v815, %v814
        %v838 = vpack.c.b16 %v817, %v816
        %v839 = vpack.c.b16 %v819, %v818
        %v840 = vpack.c.b16 %v821, %v820
        %v841 = vpack.c.b16 %v823, %v822
        %v842 = vpack.c.b16 %v825, %v824
        %v843 = vpack.c.b16 %v827, %v826
        %860 = vmatprep.subr.bf16.mxu0 0
        %861 = vmatpush1.bf16.msra.mxu0 %v828
        %862 = vmatprep.subr.bf16.mxu0 0
        %863 = vmatpush1.bf16.msra.mxu0 %v829
        %864 = vmatprep.subr.bf16.mxu0 0
        %865 = vmatpush1.bf16.msra.mxu0 %v830
        %866 = vmatprep.subr.bf16.mxu0 0
        %867 = vmatpush1.bf16.msra.mxu0 %v831
        %868 = vmatprep.subr.bf16.mxu0 0
        %869 = vmatpush1.bf16.msra.mxu0 %v832
        %870 = vmatprep.subr.bf16.mxu0 0
        %871 = vmatpush1.bf16.msra.mxu0 %v833
        %872 = vmatprep.subr.bf16.mxu0 0
        %873 = vmatpush1.bf16.msra.mxu0 %v834
        %874 = vmatprep.subr.bf16.mxu0 0
        %875 = vmatpush1.bf16.msra.mxu0 %v835
        %876 = vmatprep.subr.bf16.mxu0 0
        %877 = vmatpush1.bf16.msra.mxu0 %v836
        %878 = vmatprep.subr.bf16.mxu0 0
        %879 = vmatpush1.bf16.msra.mxu0 %v837
        %880 = vmatprep.subr.bf16.mxu0 0
        %881 = vmatpush1.bf16.msra.mxu0 %v838
        %882 = vmatprep.subr.bf16.mxu0 0
        %883 = vmatpush1.bf16.msra.mxu0 %v839
        %884 = vmatprep.subr.bf16.mxu0 0
        %885 = vmatpush1.bf16.msra.mxu0 %v840
        %886 = vmatprep.subr.bf16.mxu0 0
        %887 = vmatpush1.bf16.msra.mxu0 %v841
        %888 = vmatprep.subr.bf16.mxu0 0
        %889 = vmatpush1.bf16.msra.mxu0 %v842
        %890 = vmatprep.subr.bf16.mxu0 0
        %891 = vmatpush1.bf16.msra.mxu0 %v843
        %892 = vmatprep.mubr.bf16.mxu0 %v730
        %893 = vmatmul.mubr.bf16.gmra.mrb[0].mxu0 %v729
        %v894 = vpop.f32.mrb[0].mxu0
        %v895 = vadd.f32 0.0, %v894
        %v896 = vpop.f32.mrb[0].mxu0
        %v897 = vpop.f32.mrb[0].mxu0
        %v898 = vpop.f32.mrb[0].mxu0
        %899 = vdwg.mxu0
        %v900 = vadd.f32 %v725, %v895
        %v901 = vld [vmem:[%s2] sm:$0xf]
        %v902 = vlaneseq
        %v903 = vshrl.u32 %v902, 7
        %v904 = vsub.s32 3, %v903
        %v905 = vrot.slane %v901, %v904
        %v906 = vlaneseq
        %v907 = vshrl.u32 %v906, 7
        %v908 = vsub.s32 0, %v907
        %v909 = vrot.slane %v901, %v908
        %v910 = vmul.f32 %v900, %v909
        %v911 = vadd.f32 %v905, %v910
        %v912 = vlaneseq
        %v913 = vshrl.u32 %v912, 7
        %v914 = vsub.s32 1, %v913
        %v915 = vrot.slane %v901, %v914
        %v916 = vmul.f32 %v900, %v915
        %v918 = vrot.slane %v916, 1
        %v920 = vadd.f32 %v911, %v918
        %v921 = vlaneseq
        %v922 = vshrl.u32 %v921, 7
        %v923 = vsub.s32 2, %v922
        %v924 = vrot.slane %v901, %v923
        %v925 = vmul.f32 %v900, %v924
        %v927 = vrot.slane %v925, 2
        %v929 = vadd.f32 %v920, %v927
        %vm930 = vcmp.gt.f32.partialorder %v929, 0.0
        %v931 = vmul.f32 %v929, 0.1
        %v932 = vsel %vm930, %v929, %v931
        %933 = vst [vmem:[%s203] sm:$0x3f] %v932
        %p934 = scmp.lt.s32.totalorder %s18, 1
        %s935 = scalar_select %p934, %s18, 1
        %s936 = smul.addr %s935, 8
        %s937 = scalar_lea.vmem %s3, %s936
        // Predicated region
        $region41: #{tpu_custom_call.1} parent=31 // pred_check
          %p938 = pneg %p104
        $region42: #{tpu_custom_call.1} parent=31 // pred_check_branch
          %940 = sbr.rel (%p938) target = $region44
        $region43: #{tpu_custom_call.1} parent=31 // pred_region
          _
        $region44: #{tpu_custom_call.1} parent=31 // pred_fallthru
          _
      $region32: #{tpu_custom_call.1} parent=5 // pred_fallthru
        _
      %p941 = scmp.le.s32.totalorder 2, %s13
      // Predicated region
      $region45: #{tpu_custom_call.1} parent=5 // pred_check
        %p942 = pneg %p941
      $region46: #{tpu_custom_call.1} parent=5 // pred_check_branch
        %944 = sbr.rel (%p942) target = $region48
      $region47: #{tpu_custom_call.1} parent=5 // pred_region
        %s945 = ssub.s32 %s13, 2
        // Predicated region
        $region49: #{tpu_custom_call.1} parent=47 // pred_check
          %p946 = pneg %p110
        $region50: #{tpu_custom_call.1} parent=47 // pred_check_branch
          %948 = sbr.rel (%p946) target = $region52
        $region51: #{tpu_custom_call.1} parent=47 // pred_region
          %p949 = scmp.lt.s32.totalorder %s19, 1
          %s950 = scalar_select %p949, %s19, 1
          %s951 = smul.addr %s950, 8
          %s952 = scalar_lea.vmem %s3, %s951
        $region52: #{tpu_custom_call.1} parent=47 // pred_fallthru
          _
      $region48: #{tpu_custom_call.1} parent=5 // pred_fallthru
        _
    $region6: #{tpu_custom_call.1} parent=1 // loop_footer
      %s17 = sadd.s32 1, %s13
    $region7: #{tpu_custom_call.1} parent=1 // loop_footer_branch
      %12 = sbr.rel target = $region3
    $region8: #{tpu_custom_call.1} parent=1 // loop_exit
      _
    %953 = vsyncpa [#allocation3], 1
    %s954 = scalar_lea.sflag [#allocation3], 1
    %955 = vsyncpa %s954, 1
    %956 = vsyncpa [#allocation5], 1

</llo_original>
